<compile_context>
chip_gen: v7x
topology: tpu7x:2x2x1
jax: 0.10.0
libtpu: 0.0.40
codegen_flags: <defaults>
</compile_context>

<pallas_src>
import functools

import jax
import jax.numpy as jnp
import numpy as np
from jax.experimental import pallas as pl
from jax.experimental.pallas import tpu as pltpu

LEAKY_SLOPE = 0.01      # nn.LeakyReLU default
BN_EPS = 1e-5           # nn.BatchNorm2d default
MXU_DTYPE = jnp.bfloat16


# ----------------------------- Pallas kernel ------------------------------ #
def _conv_block_kernel(planes_ref, band0_ref, shift0_ref, band1_ref, shift1_ref,
                       o_ref, lhs_ref, act_ref, *, ho, wo, cout, num_inner):
    """Fused dSamp + conv_num x (conv3x3/BN/LeakyReLU) for one image.

    planes_ref : (1, 2, Hq, (W+2)*Cin) f32  row-parity planes of reflect-padded x
    band0_ref  : (3*slot, Wo*Cout)     bf16 banded dSamp weights (BN scale folded)
    shift0_ref : (1, Wo*Cout)          f32  dSamp BN shift, tiled over Wo
    band1_ref  : (L, 3*slot, Wo*Cout)  bf16 banded stride-1 weights
    shift1_ref : (L, 1, Wo*Cout)       f32
    o_ref      : (1, Ho, Wo*Cout)
    lhs_ref    : (Ho, 3*slot)          f32  im2col slab (one 128-aligned slot/kh)
    act_ref    : (Ho+2, (Wo+2)*Cout)   f32  row-padded activation (+2 reflect cols)
    """
    slot = lhs_ref.shape[-1] // 3

    # Lanes past each layer's real K are matched by zero rows in the banded
    # weights, so they must hold zeros (not garbage) in the slab.
    lhs_ref[...] = jnp.zeros_like(lhs_ref)

    # ---- dSamp: stride-2 conv as ONE banded matmul ------------------------
    # Output row i, tap kh reads padded row 2i+kh = row (i + kh//2) of parity
    # plane kh%2; the stride-2 column selection is folded into band0.
    piece0 = planes_ref.shape[-1]
    for kh in range(3):
        lhs_ref[:, kh * slot:kh * slot + piece0] = (
            planes_ref[0, kh % 2, kh // 2:kh // 2 + ho, :])
    y = jnp.dot(lhs_ref[...].astype(MXU_DTYPE), band0_ref[...],
                preferred_element_type=jnp.float32)
    y = y + shift0_ref[...]                      # BN shift (scale already folded)
    y = jnp.maximum(y, LEAKY_SLOPE * y)          # LeakyReLU, f32 epilogue

    # ---- conv_num x (stride-1 conv + BN + LeakyReLU), never leaves VMEM ---
    piece1 = act_ref.shape[-1]
    for l in range(num_inner):
        # Reflect padding, all via aligned scratch stores:
        #   rows 0 / Ho+1 mirror rows 2 / Ho-1;
        #   two extra column slots at the end mirror columns 1 and Wo-2
        #   (the band1 row layout uses exactly this slot order).
        act_ref[1:ho + 1, :wo * cout] = y
        act_ref[0:1, :wo * cout] = y[1:2]
        act_ref[ho + 1:ho + 2, :wo * cout] = y[ho - 2:ho - 1]
        act_ref[:, wo * cout:(wo + 1) * cout] = act_ref[:, cout:2 * cout]
        act_ref[:, (wo + 1) * cout:] = act_ref[:, (wo - 2) * cout:(wo - 1) * cout]
        for kh in range(3):
            lhs_ref[:, kh * slot:kh * slot + piece1] = act_ref[kh:kh + ho, :]
        y = jnp.dot(lhs_ref[...].astype(MXU_DTYPE), band1_ref[l],
                    preferred_element_type=jnp.float32)
        y = y + shift1_ref[l]
        y = jnp.maximum(y, LEAKY_SLOPE * y)

    o_ref[0] = y.astype(o_ref.dtype)             # lane-dense (Ho, Wo*Cout) store


# ------------------------- banded weight folding --------------------------- #
def _banded_weights(w_oihw, gamma, var, *, num_src, src_of, slot_width, wo):
    """3x3 conv + folded BN scale as a banded bf16 matrix (3*slot_width, Wo*Cout).

    Row layout: kh-major; within each kh block the first num_src*Cin rows are
    (source_column_slot, ci) and the rest are zero padding up to slot_width.
    Column layout: (j, co).  src_of(j, kw) gives the source-column slot feeding
    output column j through tap kw.
    """
    cout, cin, _, _ = w_oihw.shape
    assert num_src * cin <= slot_width
    scale = gamma / jnp.sqrt(var + BN_EPS)
    w_hwio = jnp.transpose(w_oihw, (2, 3, 1, 0)) * scale        # (3,3,Cin,Cout)
    sel = np.zeros((3, num_src, wo), np.float32)                 # (kw, src, j)
    for kw in range(3):
        for j in range(wo):
            sel[kw, src_of(j, kw), j] = 1.0
    band = jnp.einsum('kpj,hkio->hpijo', jnp.asarray(sel), w_hwio)
    band = band.reshape(3, num_src * cin, wo * cout)
    band = jnp.pad(band, ((0, 0), (0, slot_width - num_src * cin), (0, 0)))
    return band.reshape(3 * slot_width, wo * cout).astype(MXU_DTYPE)


def _bn_shift_tiled(gamma, beta, mean, var, wo):
    scale = gamma / jnp.sqrt(var + BN_EPS)
    return jnp.tile(beta - mean * scale, wo).reshape(1, -1).astype(jnp.float32)


# --------------------------------- wrapper --------------------------------- #
def conv_block_forward(x_nchw, params):
    """ConvBlock.forward: NCHW in / NCHW out; one fused Pallas call does it all."""
    x = jnp.transpose(x_nchw, (0, 2, 3, 1)).astype(jnp.float32)  # NCHW -> NHWC
    n, h, w, cin = x.shape
    assert h % 2 == 0 and w % 2 == 0, "stride-2 path assumes even spatial dims"

    (w0, g0, b0, m0, v0, stride0) = params[0]
    assert stride0 == 2
    for p in params[1:]:
        assert p[5] == 1
    cout = w0.shape[0]
    ho, wo = h // 2, w // 2
    hq, wp0 = (h + 2) // 2, w + 2
    num_inner = len(params) - 1

    # Reflect pad once + row-parity split + (W, Cin) lane fold (pure layout ops,
    # no im2col inflation; intermediate activations never leave VMEM).
    xp = jnp.pad(x, ((0, 0), (1, 1), (1, 1), (0, 0)), mode="reflect")
    planes = jnp.stack([xp[:, 0::2], xp[:, 1::2]], axis=1)       # (N,2,Hq,W+2,Cin)
    planes = planes.reshape(n, 2, hq, wp0 * cin)

    # 128-aligned slot per kh-tap in the im2col slab.
    slot = ((max(wp0 * cin, (wo + 2) * cout) + 127) // 128) * 128

    # Banded weights / folded BN affine (precomputed once in the wrapper).
    band0 = _banded_weights(w0, g0, v0, num_src=wp0,
                            src_of=lambda j, kw: 2 * j + kw,
                            slot_width=slot, wo=wo)
    shift0 = _bn_shift_tiled(g0, b0, m0, v0, wo)

    def _inner_src(j, kw):
        c = j + kw - 1                 # column in the conceptually padded input
        if 0 <= c < wo:
            return c                   # direct column
        return wo if c < 0 else wo + 1  # left / right reflect slots

    if num_inner > 0:
        band1 = jnp.stack([
            _banded_weights(wl, gl, vl, num_src=wo + 2, src_of=_inner_src,
                            slot_width=slot, wo=wo)
            for (wl, gl, bl, ml, vl, sl) in params[1:]])
        shift1 = jnp.stack([_bn_shift_tiled(gl, bl, ml, vl, wo)
                            for (wl, gl, bl, ml, vl, sl) in params[1:]])
    else:  # dummies, never read (static inner-layer loop has zero iterations)
        band1 = jnp.zeros((1, 3 * slot, wo * cout), MXU_DTYPE)
        shift1 = jnp.zeros((1, 1, wo * cout), jnp.float32)
    l_eff = band1.shape[0]

    kernel = functools.partial(_conv_block_kernel, ho=ho, wo=wo, cout=cout,
                               num_inner=num_inner)
    out = pl.pallas_call(
        kernel,
        out_shape=jax.ShapeDtypeStruct((n, ho, wo * cout), x.dtype),
        grid_spec=pltpu.PrefetchScalarGridSpec(
            num_scalar_prefetch=0,
            grid=(n,),                                    # one image per step
            in_specs=[
                pl.BlockSpec((1, 2, hq, wp0 * cin), lambda i: (i, 0, 0, 0)),
                pl.BlockSpec((3 * slot, wo * cout), lambda i: (0, 0)),
                pl.BlockSpec((1, wo * cout), lambda i: (0, 0)),
                pl.BlockSpec((l_eff, 3 * slot, wo * cout), lambda i: (0, 0, 0)),
                pl.BlockSpec((l_eff, 1, wo * cout), lambda i: (0, 0, 0)),
            ],
            out_specs=pl.BlockSpec((1, ho, wo * cout), lambda i: (i, 0, 0)),
            scratch_shapes=[
                pltpu.VMEM((ho, 3 * slot), jnp.float32),             # im2col slab
                pltpu.VMEM((ho + 2, (wo + 2) * cout), jnp.float32),  # padded act
            ],
        ),
        compiler_params=pltpu.CompilerParams(
            dimension_semantics=("parallel",),            # megacore over batch
            vmem_limit_bytes=32 * 1024 * 1024,            # KB-scale blocks; fits all gens
        ),
    )(planes, band0, shift0, band1, shift1)

    out = out.reshape(n, ho, wo, cout)
    return jnp.transpose(out, (0, 3, 1, 2))               # NHWC -> NCHW


# ----------------------------- params / model ------------------------------ #
def init_conv_block_params(in_channel, out_channel, conv_num, key):
    """Deterministic parameter init matching the module's shapes."""
    params = []
    keys = jax.random.split(key, conv_num + 1)

    def one_layer(k, cin, cout, stride):
        kw_, kg, kb, km = jax.random.split(k, 4)
        fan_in = cin * 9
        bound = 1.0 / np.sqrt(fan_in)
        w = jax.random.uniform(kw_, (cout, cin, 3, 3), jnp.float32, -bound, bound)
        gamma = jax.random.uniform(kg, (cout,), jnp.float32, 0.5, 1.5)
        beta = jax.random.uniform(kb, (cout,), jnp.float32, -0.1, 0.1)
        mean = jax.random.uniform(km, (cout,), jnp.float32, -0.1, 0.1)
        var = jnp.full((cout,), 0.9, jnp.float32)
        return (w, gamma, beta, mean, var, stride)

    params.append(one_layer(keys[0], in_channel, out_channel, 2))   # dSamp
    for i in range(conv_num):
        params.append(one_layer(keys[i + 1], out_channel, out_channel, 1))
    return params


def conv_block_reference(x_nchw, params):
    """Pure-JAX reference with matching numerics (bf16 MXU operands, f32 accum)."""
    x = jnp.transpose(x_nchw, (0, 2, 3, 1)).astype(jnp.float32)
    for (w, g, b, m, v, stride) in params:
        scale = g / jnp.sqrt(v + BN_EPS)
        shift = b - m * scale
        w_hwio = (jnp.transpose(w, (2, 3, 1, 0)) * scale).astype(MXU_DTYPE)
        xp = jnp.pad(x, ((0, 0), (1, 1), (1, 1), (0, 0)),
                     mode="reflect").astype(MXU_DTYPE)
        y = jax.lax.conv_general_dilated(
            xp, w_hwio, (stride, stride), "VALID",
            dimension_numbers=("NHWC", "HWIO", "NHWC"),
            preferred_element_type=jnp.float32)
        y = y + shift
        x = jnp.maximum(y, LEAKY_SLOPE * y)
    return jnp.transpose(x, (0, 3, 1, 2))


if __name__ == "__main__":
    key = jax.random.PRNGKey(0)
    k_x, k_p = jax.random.split(key)

    in_channel, out_channel, conv_num = 4, 8, 2
    x = jax.random.normal(k_x, (2, in_channel, 16, 16), jnp.float32)   # NCHW

    params = init_conv_block_params(in_channel, out_channel, conv_num, k_p)

    out = jax.block_until_ready(conv_block_forward(x, params))
    assert out.shape == (2, out_channel, 8, 8), out.shape

    ref = jax.block_until_ready(conv_block_reference(x, params))
    # Kernel and reference use identical bf16 MXU operands with f32 accumulation;
    # remaining drift is accumulation-order / bf16 re-rounding noise only, so the
    # check is 10x tighter than the previous 2e-2.
    np.testing.assert_allclose(np.asarray(out), np.asarray(ref),
                               rtol=2e-3, atol=2e-3)

    print("KERNEL_OK")
</pallas_src>

<mosaic_0001>
module attributes {stable_mosaic.version = 11 : i64} {
  func.func @_conv_block_kernel(%arg0: i32, %arg1: memref<1x2x9x72xf32, #tpu.memory_space<vmem>>, %arg2: memref<384x64xbf16, #tpu.memory_space<vmem>>, %arg3: memref<1x64xf32, #tpu.memory_space<vmem>>, %arg4: memref<2x384x64xbf16, #tpu.memory_space<vmem>>, %arg5: memref<2x1x64xf32, #tpu.memory_space<vmem>>, %arg6: memref<1x8x64xf32, #tpu.memory_space<vmem>>, %arg7: memref<8x384xf32, #tpu.memory_space<vmem>>, %arg8: memref<10x80xf32, #tpu.memory_space<vmem>>) attributes {dimension_semantics = [#tpu.dimension_semantics<parallel>], iteration_bounds = array<i64: 2>, scalar_prefetch = 0 : i64, scratch_operands = 2 : i64, tpu.core_type = #tpu.core_type<tc>, window_params = [{transform_indices = @transform_0, window_bounds = array<i64: 1, 2, 9, 72>}, {pipeline_mode = #tpu.pipeline_mode<synchronous>, transform_indices = @transform_1, window_bounds = array<i64: 384, 64>}, {pipeline_mode = #tpu.pipeline_mode<synchronous>, transform_indices = @transform_2, window_bounds = array<i64: 1, 64>}, {pipeline_mode = #tpu.pipeline_mode<synchronous>, transform_indices = @transform_3, window_bounds = array<i64: 2, 384, 64>}, {pipeline_mode = #tpu.pipeline_mode<synchronous>, transform_indices = @transform_4, window_bounds = array<i64: 2, 1, 64>}, {transform_indices = @transform_5, window_bounds = array<i64: 1, 8, 64>}]} {
    %cst = arith.constant 0.000000e+00 : f32
    %0 = vector.broadcast %cst : f32 to vector<8x384xf32>
    %c0 = arith.constant 0 : index
    %c0_0 = arith.constant 0 : index
    %1 = vector.load %arg7[%c0, %c0_0] : memref<8x384xf32, #tpu.memory_space<vmem>>, vector<8x384xf32>
    tpu.vector_store %arg7[%c0, %c0_0], %0 {strides = array<i32>} : memref<8x384xf32, #tpu.memory_space<vmem>>, vector<8x384xf32>,
    %c0_1 = arith.constant 0 : index
    %c0_2 = arith.constant 0 : index
    %c0_3 = arith.constant 0 : index
    %c0_4 = arith.constant 0 : index
    %2 = vector.load %arg1[%c0_1, %c0_2, %c0_3, %c0_4] : memref<1x2x9x72xf32, #tpu.memory_space<vmem>>, vector<1x1x8x72xf32>
    %3 = vector.shape_cast %2 : vector<1x1x8x72xf32> to vector<8x72xf32>
    %c0_5 = arith.constant 0 : index
    %c0_6 = arith.constant 0 : index
    %4 = vector.load %arg7[%c0_5, %c0_6] : memref<8x384xf32, #tpu.memory_space<vmem>>, vector<8x72xf32>
    tpu.vector_store %arg7[%c0_5, %c0_6], %3 {strides = array<i32>} : memref<8x384xf32, #tpu.memory_space<vmem>>, vector<8x72xf32>,
    %c0_7 = arith.constant 0 : index
    %c1 = arith.constant 1 : index
    %c0_8 = arith.constant 0 : index
    %c0_9 = arith.constant 0 : index
    %5 = vector.load %arg1[%c0_7, %c1, %c0_8, %c0_9] : memref<1x2x9x72xf32, #tpu.memory_space<vmem>>, vector<1x1x8x72xf32>
    %6 = vector.shape_cast %5 : vector<1x1x8x72xf32> to vector<8x72xf32>
    %c0_10 = arith.constant 0 : index
    %c128 = arith.constant 128 : index
    %7 = vector.load %arg7[%c0_10, %c128] : memref<8x384xf32, #tpu.memory_space<vmem>>, vector<8x72xf32>
    tpu.vector_store %arg7[%c0_10, %c128], %6 {strides = array<i32>} : memref<8x384xf32, #tpu.memory_space<vmem>>, vector<8x72xf32>,
    %c0_11 = arith.constant 0 : index
    %c0_12 = arith.constant 0 : index
    %c1_13 = arith.constant 1 : index
    %c0_14 = arith.constant 0 : index
    %8 = vector.load %arg1[%c0_11, %c0_12, %c1_13, %c0_14] : memref<1x2x9x72xf32, #tpu.memory_space<vmem>>, vector<1x1x8x72xf32>
    %9 = vector.shape_cast %8 : vector<1x1x8x72xf32> to vector<8x72xf32>
    %c0_15 = arith.constant 0 : index
    %c256 = arith.constant 256 : index
    %10 = vector.load %arg7[%c0_15, %c256] : memref<8x384xf32, #tpu.memory_space<vmem>>, vector<8x72xf32>
    tpu.vector_store %arg7[%c0_15, %c256], %9 {strides = array<i32>} : memref<8x384xf32, #tpu.memory_space<vmem>>, vector<8x72xf32>,
    %c0_16 = arith.constant 0 : index
    %c0_17 = arith.constant 0 : index
    %11 = vector.load %arg7[%c0_16, %c0_17] : memref<8x384xf32, #tpu.memory_space<vmem>>, vector<8x384xf32>
    %12 = arith.truncf %11 : vector<8x384xf32> to vector<8x384xbf16>
    %c0_18 = arith.constant 0 : index
    %c0_19 = arith.constant 0 : index
    %13 = vector.load %arg2[%c0_18, %c0_19] : memref<384x64xbf16, #tpu.memory_space<vmem>>, vector<384x64xbf16>
    %cst_20 = arith.constant dense<0.000000e+00> : vector<8x64xf32>
    %14 = tpu.matmul %12, %13, %cst_20 {dimension_numbers = #tpu.dot_dimension_numbers<[1], [0], [0], [1], [0, 0, 1, 1], [], []>} : vector<8x384xbf16>, vector<384x64xbf16>, vector<8x64xf32> -> vector<8x64xf32>
    %c0_21 = arith.constant 0 : index
    %c0_22 = arith.constant 0 : index
    %15 = vector.load %arg3[%c0_21, %c0_22] : memref<1x64xf32, #tpu.memory_space<vmem>>, vector<1x64xf32>
    %16 = vector.broadcast %15 : vector<1x64xf32> to vector<8x64xf32>
    %17 = arith.addf %14, %16 : vector<8x64xf32>
    %cst_23 = arith.constant 0.00999999977 : f32
    %18 = vector.broadcast %cst_23 : f32 to vector<8x64xf32>
    %19 = arith.mulf %18, %17 : vector<8x64xf32>
    %20 = arith.maximumf %17, %19 : vector<8x64xf32>
    %c1_24 = arith.constant 1 : index
    %c0_25 = arith.constant 0 : index
    %21 = vector.load %arg8[%c1_24, %c0_25] : memref<10x80xf32, #tpu.memory_space<vmem>>, vector<8x64xf32>
    tpu.vector_store %arg8[%c1_24, %c0_25], %20 {strides = array<i32>} : memref<10x80xf32, #tpu.memory_space<vmem>>, vector<8x64xf32>,
    %22 = vector.extract_strided_slice %20 {offsets = [1, 0], sizes = [1, 64], strides = [1, 1]} : vector<8x64xf32> to vector<1x64xf32>
    %c0_26 = arith.constant 0 : index
    %c0_27 = arith.constant 0 : index
    %23 = vector.load %arg8[%c0_26, %c0_27] : memref<10x80xf32, #tpu.memory_space<vmem>>, vector<1x64xf32>
    tpu.vector_store %arg8[%c0_26, %c0_27], %22 {strides = array<i32>} : memref<10x80xf32, #tpu.memory_space<vmem>>, vector<1x64xf32>,
    %24 = vector.extract_strided_slice %20 {offsets = [6, 0], sizes = [1, 64], strides = [1, 1]} : vector<8x64xf32> to vector<1x64xf32>
    %c9 = arith.constant 9 : index
    %c0_28 = arith.constant 0 : index
    %25 = vector.load %arg8[%c9, %c0_28] : memref<10x80xf32, #tpu.memory_space<vmem>>, vector<1x64xf32>
    tpu.vector_store %arg8[%c9, %c0_28], %24 {strides = array<i32>} : memref<10x80xf32, #tpu.memory_space<vmem>>, vector<1x64xf32>,
    %c0_29 = arith.constant 0 : index
    %c8 = arith.constant 8 : index
    %26 = vector.load %arg8[%c0_29, %c8] : memref<10x80xf32, #tpu.memory_space<vmem>>, vector<10x8xf32>
    %c0_30 = arith.constant 0 : index
    %c64 = arith.constant 64 : index
    %27 = vector.load %arg8[%c0_30, %c64] : memref<10x80xf32, #tpu.memory_space<vmem>>, vector<10x8xf32>
    tpu.vector_store %arg8[%c0_30, %c64], %26 {strides = array<i32>} : memref<10x80xf32, #tpu.memory_space<vmem>>, vector<10x8xf32>,
    %c0_31 = arith.constant 0 : index
    %c48 = arith.constant 48 : index
    %28 = vector.load %arg8[%c0_31, %c48] : memref<10x80xf32, #tpu.memory_space<vmem>>, vector<10x8xf32>
    %c0_32 = arith.constant 0 : index
    %c72 = arith.constant 72 : index
    %29 = vector.load %arg8[%c0_32, %c72] : memref<10x80xf32, #tpu.memory_space<vmem>>, vector<10x8xf32>
    tpu.vector_store %arg8[%c0_32, %c72], %28 {strides = array<i32>} : memref<10x80xf32, #tpu.memory_space<vmem>>, vector<10x8xf32>,
    %c0_33 = arith.constant 0 : index
    %c0_34 = arith.constant 0 : index
    %30 = vector.load %arg8[%c0_33, %c0_34] : memref<10x80xf32, #tpu.memory_space<vmem>>, vector<8x80xf32>
    %c0_35 = arith.constant 0 : index
    %c0_36 = arith.constant 0 : index
    %31 = vector.load %arg7[%c0_35, %c0_36] : memref<8x384xf32, #tpu.memory_space<vmem>>, vector<8x80xf32>
    tpu.vector_store %arg7[%c0_35, %c0_36], %30 {strides = array<i32>} : memref<8x384xf32, #tpu.memory_space<vmem>>, vector<8x80xf32>,
    %c1_37 = arith.constant 1 : index
    %c0_38 = arith.constant 0 : index
    %32 = vector.load %arg8[%c1_37, %c0_38] : memref<10x80xf32, #tpu.memory_space<vmem>>, vector<8x80xf32>
    %c0_39 = arith.constant 0 : index
    %c128_40 = arith.constant 128 : index
    %33 = vector.load %arg7[%c0_39, %c128_40] : memref<8x384xf32, #tpu.memory_space<vmem>>, vector<8x80xf32>
    tpu.vector_store %arg7[%c0_39, %c128_40], %32 {strides = array<i32>} : memref<8x384xf32, #tpu.memory_space<vmem>>, vector<8x80xf32>,
    %c2 = arith.constant 2 : index
    %c0_41 = arith.constant 0 : index
    %34 = vector.load %arg8[%c2, %c0_41] : memref<10x80xf32, #tpu.memory_space<vmem>>, vector<8x80xf32>
    %c0_42 = arith.constant 0 : index
    %c256_43 = arith.constant 256 : index
    %35 = vector.load %arg7[%c0_42, %c256_43] : memref<8x384xf32, #tpu.memory_space<vmem>>, vector<8x80xf32>
    tpu.vector_store %arg7[%c0_42, %c256_43], %34 {strides = array<i32>} : memref<8x384xf32, #tpu.memory_space<vmem>>, vector<8x80xf32>,
    %c0_44 = arith.constant 0 : index
    %c0_45 = arith.constant 0 : index
    %36 = vector.load %arg7[%c0_44, %c0_45] : memref<8x384xf32, #tpu.memory_space<vmem>>, vector<8x384xf32>
    %37 = arith.truncf %36 : vector<8x384xf32> to vector<8x384xbf16>
    %c0_46 = arith.constant 0 : index
    %c0_47 = arith.constant 0 : index
    %c0_48 = arith.constant 0 : index
    %38 = vector.load %arg4[%c0_46, %c0_47, %c0_48] : memref<2x384x64xbf16, #tpu.memory_space<vmem>>, vector<1x384x64xbf16>
    %39 = vector.shape_cast %38 : vector<1x384x64xbf16> to vector<384x64xbf16>
    %cst_49 = arith.constant dense<0.000000e+00> : vector<8x64xf32>
    %40 = tpu.matmul %37, %39, %cst_49 {dimension_numbers = #tpu.dot_dimension_numbers<[1], [0], [0], [1], [0, 0, 1, 1], [], []>} : vector<8x384xbf16>, vector<384x64xbf16>, vector<8x64xf32> -> vector<8x64xf32>
    %c0_50 = arith.constant 0 : index
    %c0_51 = arith.constant 0 : index
    %c0_52 = arith.constant 0 : index
    %41 = vector.load %arg5[%c0_50, %c0_51, %c0_52] : memref<2x1x64xf32, #tpu.memory_space<vmem>>, vector<1x1x64xf32>
    %42 = vector.shape_cast %41 : vector<1x1x64xf32> to vector<1x64xf32>
    %43 = vector.broadcast %42 : vector<1x64xf32> to vector<8x64xf32>
    %44 = arith.addf %40, %43 : vector<8x64xf32>
    %cst_53 = arith.constant 0.00999999977 : f32
    %45 = vector.broadcast %cst_53 : f32 to vector<8x64xf32>
    %46 = arith.mulf %45, %44 : vector<8x64xf32>
    %47 = arith.maximumf %44, %46 : vector<8x64xf32>
    %c1_54 = arith.constant 1 : index
    %c0_55 = arith.constant 0 : index
    %48 = vector.load %arg8[%c1_54, %c0_55] : memref<10x80xf32, #tpu.memory_space<vmem>>, vector<8x64xf32>
    tpu.vector_store %arg8[%c1_54, %c0_55], %47 {strides = array<i32>} : memref<10x80xf32, #tpu.memory_space<vmem>>, vector<8x64xf32>,
    %49 = vector.extract_strided_slice %47 {offsets = [1, 0], sizes = [1, 64], strides = [1, 1]} : vector<8x64xf32> to vector<1x64xf32>
    %c0_56 = arith.constant 0 : index
    %c0_57 = arith.constant 0 : index
    %50 = vector.load %arg8[%c0_56, %c0_57] : memref<10x80xf32, #tpu.memory_space<vmem>>, vector<1x64xf32>
    tpu.vector_store %arg8[%c0_56, %c0_57], %49 {strides = array<i32>} : memref<10x80xf32, #tpu.memory_space<vmem>>, vector<1x64xf32>,
    %51 = vector.extract_strided_slice %47 {offsets = [6, 0], sizes = [1, 64], strides = [1, 1]} : vector<8x64xf32> to vector<1x64xf32>
    %c9_58 = arith.constant 9 : index
    %c0_59 = arith.constant 0 : index
    %52 = vector.load %arg8[%c9_58, %c0_59] : memref<10x80xf32, #tpu.memory_space<vmem>>, vector<1x64xf32>
    tpu.vector_store %arg8[%c9_58, %c0_59], %51 {strides = array<i32>} : memref<10x80xf32, #tpu.memory_space<vmem>>, vector<1x64xf32>,
    %c0_60 = arith.constant 0 : index
    %c8_61 = arith.constant 8 : index
    %53 = vector.load %arg8[%c0_60, %c8_61] : memref<10x80xf32, #tpu.memory_space<vmem>>, vector<10x8xf32>
    %c0_62 = arith.constant 0 : index
    %c64_63 = arith.constant 64 : index
    %54 = vector.load %arg8[%c0_62, %c64_63] : memref<10x80xf32, #tpu.memory_space<vmem>>, vector<10x8xf32>
    tpu.vector_store %arg8[%c0_62, %c64_63], %53 {strides = array<i32>} : memref<10x80xf32, #tpu.memory_space<vmem>>, vector<10x8xf32>,
    %c0_64 = arith.constant 0 : index
    %c48_65 = arith.constant 48 : index
    %55 = vector.load %arg8[%c0_64, %c48_65] : memref<10x80xf32, #tpu.memory_space<vmem>>, vector<10x8xf32>
    %c0_66 = arith.constant 0 : index
    %c72_67 = arith.constant 72 : index
    %56 = vector.load %arg8[%c0_66, %c72_67] : memref<10x80xf32, #tpu.memory_space<vmem>>, vector<10x8xf32>
    tpu.vector_store %arg8[%c0_66, %c72_67], %55 {strides = array<i32>} : memref<10x80xf32, #tpu.memory_space<vmem>>, vector<10x8xf32>,
    %c0_68 = arith.constant 0 : index
    %c0_69 = arith.constant 0 : index
    %57 = vector.load %arg8[%c0_68, %c0_69] : memref<10x80xf32, #tpu.memory_space<vmem>>, vector<8x80xf32>
    %c0_70 = arith.constant 0 : index
    %c0_71 = arith.constant 0 : index
    %58 = vector.load %arg7[%c0_70, %c0_71] : memref<8x384xf32, #tpu.memory_space<vmem>>, vector<8x80xf32>
    tpu.vector_store %arg7[%c0_70, %c0_71], %57 {strides = array<i32>} : memref<8x384xf32, #tpu.memory_space<vmem>>, vector<8x80xf32>,
    %c1_72 = arith.constant 1 : index
    %c0_73 = arith.constant 0 : index
    %59 = vector.load %arg8[%c1_72, %c0_73] : memref<10x80xf32, #tpu.memory_space<vmem>>, vector<8x80xf32>
    %c0_74 = arith.constant 0 : index
    %c128_75 = arith.constant 128 : index
    %60 = vector.load %arg7[%c0_74, %c128_75] : memref<8x384xf32, #tpu.memory_space<vmem>>, vector<8x80xf32>
    tpu.vector_store %arg7[%c0_74, %c128_75], %59 {strides = array<i32>} : memref<8x384xf32, #tpu.memory_space<vmem>>, vector<8x80xf32>,
    %c2_76 = arith.constant 2 : index
    %c0_77 = arith.constant 0 : index
    %61 = vector.load %arg8[%c2_76, %c0_77] : memref<10x80xf32, #tpu.memory_space<vmem>>, vector<8x80xf32>
    %c0_78 = arith.constant 0 : index
    %c256_79 = arith.constant 256 : index
    %62 = vector.load %arg7[%c0_78, %c256_79] : memref<8x384xf32, #tpu.memory_space<vmem>>, vector<8x80xf32>
    tpu.vector_store %arg7[%c0_78, %c256_79], %61 {strides = array<i32>} : memref<8x384xf32, #tpu.memory_space<vmem>>, vector<8x80xf32>,
    %c0_80 = arith.constant 0 : index
    %c0_81 = arith.constant 0 : index
    %63 = vector.load %arg7[%c0_80, %c0_81] : memref<8x384xf32, #tpu.memory_space<vmem>>, vector<8x384xf32>
    %64 = arith.truncf %63 : vector<8x384xf32> to vector<8x384xbf16>
    %c1_82 = arith.constant 1 : index
    %c0_83 = arith.constant 0 : index
    %c0_84 = arith.constant 0 : index
    %65 = vector.load %arg4[%c1_82, %c0_83, %c0_84] : memref<2x384x64xbf16, #tpu.memory_space<vmem>>, vector<1x384x64xbf16>
    %66 = vector.shape_cast %65 : vector<1x384x64xbf16> to vector<384x64xbf16>
    %cst_85 = arith.constant dense<0.000000e+00> : vector<8x64xf32>
    %67 = tpu.matmul %64, %66, %cst_85 {dimension_numbers = #tpu.dot_dimension_numbers<[1], [0], [0], [1], [0, 0, 1, 1], [], []>} : vector<8x384xbf16>, vector<384x64xbf16>, vector<8x64xf32> -> vector<8x64xf32>
    %c1_86 = arith.constant 1 : index
    %c0_87 = arith.constant 0 : index
    %c0_88 = arith.constant 0 : index
    %68 = vector.load %arg5[%c1_86, %c0_87, %c0_88] : memref<2x1x64xf32, #tpu.memory_space<vmem>>, vector<1x1x64xf32>
    %69 = vector.shape_cast %68 : vector<1x1x64xf32> to vector<1x64xf32>
    %70 = vector.broadcast %69 : vector<1x64xf32> to vector<8x64xf32>
    %71 = arith.addf %67, %70 : vector<8x64xf32>
    %cst_89 = arith.constant 0.00999999977 : f32
    %72 = vector.broadcast %cst_89 : f32 to vector<8x64xf32>
    %73 = arith.mulf %72, %71 : vector<8x64xf32>
    %74 = arith.maximumf %71, %73 : vector<8x64xf32>
    %c0_90 = arith.constant 0 : index
    %c0_91 = arith.constant 0 : index
    %c0_92 = arith.constant 0 : index
    %75 = vector.load %arg6[%c0_90, %c0_91, %c0_92] : memref<1x8x64xf32, #tpu.memory_space<vmem>>, vector<1x8x64xf32>
    %76 = vector.shape_cast %75 : vector<1x8x64xf32> to vector<8x64xf32>
    %77 = vector.shape_cast %74 : vector<8x64xf32> to vector<1x8x64xf32>
    tpu.vector_store %arg6[%c0_90, %c0_91, %c0_92], %77 {strides = array<i32>} : memref<1x8x64xf32, #tpu.memory_space<vmem>>, vector<1x8x64xf32>,
    return
  }
  func.func @transform_0(%arg0: i32) -> (i32, i32, i32, i32) {
    %c0_i32 = arith.constant 0 : i32
    %c0_i32_0 = arith.constant 0 : i32
    %c0_i32_1 = arith.constant 0 : i32
    %c0_i32_2 = arith.constant 0 : i32
    return %arg0, %c0_i32, %c0_i32_0, %c0_i32_1 : i32, i32, i32, i32
  }
  func.func @transform_1(%arg0: i32) -> (i32, i32) {
    %c0_i32 = arith.constant 0 : i32
    %c0_i32_0 = arith.constant 0 : i32
    %c0_i32_1 = arith.constant 0 : i32
    return %c0_i32, %c0_i32_0 : i32, i32
  }
  func.func @transform_2(%arg0: i32) -> (i32, i32) {
    %c0_i32 = arith.constant 0 : i32
    %c0_i32_0 = arith.constant 0 : i32
    %c0_i32_1 = arith.constant 0 : i32
    return %c0_i32, %c0_i32_0 : i32, i32
  }
  func.func @transform_3(%arg0: i32) -> (i32, i32, i32) {
    %c0_i32 = arith.constant 0 : i32
    %c0_i32_0 = arith.constant 0 : i32
    %c0_i32_1 = arith.constant 0 : i32
    %c0_i32_2 = arith.constant 0 : i32
    return %c0_i32, %c0_i32_0, %c0_i32_1 : i32, i32, i32
  }
  func.func @transform_4(%arg0: i32) -> (i32, i32, i32) {
    %c0_i32 = arith.constant 0 : i32
    %c0_i32_0 = arith.constant 0 : i32
    %c0_i32_1 = arith.constant 0 : i32
    %c0_i32_2 = arith.constant 0 : i32
    return %c0_i32, %c0_i32_0, %c0_i32_1 : i32, i32, i32
  }
  func.func @transform_5(%arg0: i32) -> (i32, i32, i32) {
    %c0_i32 = arith.constant 0 : i32
    %c0_i32_0 = arith.constant 0 : i32
    %c0_i32_1 = arith.constant 0 : i32
    return %arg0, %c0_i32, %c0_i32_0 : i32, i32, i32
  }
}

</mosaic_0001>

<llo_original>
// kernel: tpu_custom_call.1
$region0: #{tpu_custom_call.1}
  #allocation0 [shape = 'u32[]', space=smem, size = 0x4, offset = 0x4, fixed_abs, tag = 'smem constant byte address 0x4 - core index']
  #allocation1 [shape = 'u32[144,128]{1,0:T(1,128)}', space=vmem, size = 0x12000, scoped, tag = 'internal scratch']
  #allocation2 [shape = 'f32[8,384]{1,0:T(8,128)}', space=vmem, size = 0x3000, scoped, tag = 'scratch operand']
  #allocation3 [shape = 'f32[10,80]{1,0:T(8,128)}', space=vmem, size = 0x2000, scoped, tag = 'scratch operand']
  %s0 = inlined_call_operand.vmem [shape: f32[2,2,9,72], index: 0, kind: input, shape index: {}]
  %s1 = inlined_call_operand.vmem [shape: bf16[384,64], index: 1, kind: input, shape index: {}]
  %s2 = inlined_call_operand.vmem [shape: f32[1,64], index: 2, kind: input, shape index: {}]
  %s3 = inlined_call_operand.vmem [shape: bf16[2,384,64], index: 3, kind: input, shape index: {}]
  %s4 = inlined_call_operand.vmem [shape: f32[2,1,64], index: 4, kind: input, shape index: {}]
  %s5 = inlined_call_operand.hbm [shape: f32[2,8,64], index: 5, kind: output, shape index: {}]
  %s6 = sld [smem:[#allocation0]]
  $region53: #{tpu_custom_call.1} parent=0
    _
  %s8 = ssub.s32 1, %s6
  %s9 = scalar_select 0, %s8, %s6
  $region1: #{tpu_custom_call.1} parent=0
    #allocation4 [shape = 'u8[8192]{0}', space=vmem, size = 0x2000, scoped, tag = 'output window, operand 0']
    #allocation5 [shape = 's32[2]{0}', space=sflag, size = 0x8, scoped, tag = 'scoped memory for tpu_custom_call.1']
    %10 = vsyncpa [#allocation5], 0
    %s11 = scalar_lea.sflag [#allocation5], 1
    %12 = vsyncpa %s11, 0
    loop: start=0, step=1, limit=4
    $region2: #{tpu_custom_call.1} parent=1 // loop_pre_header
      _
    $region3: #{tpu_custom_call.1} parent=1 // loop_header
      %s14 = sphi 0, %s18
      %p15 = scmp.ge.s32.totalorder %s14, 4
      %s24 = sphi 0, %s26
      %s27 = sphi 0, %s24
      %s28 = sphi 0, %s27
      %s44 = sphi 0, %s28
      %s48 = sphi 0, %s48
      %s50 = sphi 0, %s48
      %s51 = sphi 0, %s50
      %s65 = sphi 0, %s51
      %s69 = sphi 0, %s69
      %s71 = sphi 0, %s69
      %s72 = sphi 0, %s71
      %s86 = sphi 0, %s72
      %s90 = sphi 0, %s90
      %s92 = sphi 0, %s90
      %s93 = sphi 0, %s92
      %s107 = sphi 0, %s93
      %s111 = sphi 0, %s111
      %s113 = sphi 0, %s111
      %s114 = sphi 0, %s113
      %s128 = sphi 0, %s114
      %s134 = sphi 0, %s136
      %s137 = sphi 0, %s134
      %s138 = sphi 0, %s137
      %s154 = sphi 0, %s138
    $region4: #{tpu_custom_call.1} parent=1 // loop_header_branch
      %17 = sbr.rel (%p15) target = $region8
    $region5: #{tpu_custom_call.1} parent=1 // loop_body
      %s19 = ssub.s32 %s14, 1
      %s20 = ssub.s32 %s14, 2
      %s21 = sadd.s32 %s14, 1
      %s22 = ssub.s32 %s14, %s21
      %p23 = scmp.eq.s32.totalorder %s22, 0
      %s25 = sadd.s32 %s24, 1
      %s26 = scalar_select %p23, %s24, %s25
      %p29 = pneg %p23
      %p30 = scmp.eq.s32.totalorder %s14, 1
      %p31 = por %p29, %p30
      %p32 = scmp.ne.s32.totalorder %s24, %s27
      %p33 = scmp.eq.s32.totalorder %s14, 0
      %p34 = por %p32, %p33
      %p35 = scmp.ne.s32.totalorder %s24, %s27
      %p36 = scmp.eq.s32.totalorder %s19, 1
      %p37 = por %p35, %p36
      %p38 = scmp.ne.s32.totalorder %s27, %s28
      %p39 = scmp.eq.s32.totalorder %s19, 0
      %p40 = por %p38, %p39
      %p41 = scmp.ne.s32.totalorder %s27, %s28
      %p42 = scmp.eq.s32.totalorder %s20, 1
      %p43 = por %p41, %p42
      %p45 = scmp.ne.s32.totalorder %s28, %s44
      %p46 = scmp.eq.s32.totalorder %s20, 0
      %p47 = por %p45, %p46
      %s49 = sadd.s32 %s48, 1
      %p52 = scmp.eq.s32.totalorder %s14, 1
      %p53 = scmp.ne.s32.totalorder %s48, %s50
      %p54 = scmp.eq.s32.totalorder %s14, 0
      %p55 = por %p53, %p54
      %p56 = scmp.ne.s32.totalorder %s48, %s50
      %p57 = scmp.eq.s32.totalorder %s19, 1
      %p58 = por %p56, %p57
      %p59 = scmp.ne.s32.totalorder %s50, %s51
      %p60 = scmp.eq.s32.totalorder %s19, 0
      %p61 = por %p59, %p60
      %p62 = scmp.ne.s32.totalorder %s50, %s51
      %p63 = scmp.eq.s32.totalorder %s20, 1
      %p64 = por %p62, %p63
      %p66 = scmp.ne.s32.totalorder %s51, %s65
      %p67 = scmp.eq.s32.totalorder %s20, 0
      %p68 = por %p66, %p67
      %s70 = sadd.s32 %s69, 1
      %p73 = scmp.eq.s32.totalorder %s14, 1
      %p74 = scmp.ne.s32.totalorder %s69, %s71
      %p75 = scmp.eq.s32.totalorder %s14, 0
      %p76 = por %p74, %p75
      %p77 = scmp.ne.s32.totalorder %s69, %s71
      %p78 = scmp.eq.s32.totalorder %s19, 1
      %p79 = por %p77, %p78
      %p80 = scmp.ne.s32.totalorder %s71, %s72
      %p81 = scmp.eq.s32.totalorder %s19, 0
      %p82 = por %p80, %p81
      %p83 = scmp.ne.s32.totalorder %s71, %s72
      %p84 = scmp.eq.s32.totalorder %s20, 1
      %p85 = por %p83, %p84
      %p87 = scmp.ne.s32.totalorder %s72, %s86
      %p88 = scmp.eq.s32.totalorder %s20, 0
      %p89 = por %p87, %p88
      %s91 = sadd.s32 %s90, 1
      %p94 = scmp.eq.s32.totalorder %s14, 1
      %p95 = scmp.ne.s32.totalorder %s90, %s92
      %p96 = scmp.eq.s32.totalorder %s14, 0
      %p97 = por %p95, %p96
      %p98 = scmp.ne.s32.totalorder %s90, %s92
      %p99 = scmp.eq.s32.totalorder %s19, 1
      %p100 = por %p98, %p99
      %p101 = scmp.ne.s32.totalorder %s92, %s93
      %p102 = scmp.eq.s32.totalorder %s19, 0
      %p103 = por %p101, %p102
      %p104 = scmp.ne.s32.totalorder %s92, %s93
      %p105 = scmp.eq.s32.totalorder %s20, 1
      %p106 = por %p104, %p105
      %p108 = scmp.ne.s32.totalorder %s93, %s107
      %p109 = scmp.eq.s32.totalorder %s20, 0
      %p110 = por %p108, %p109
      %s112 = sadd.s32 %s111, 1
      %p115 = scmp.eq.s32.totalorder %s14, 1
      %p116 = scmp.ne.s32.totalorder %s111, %s113
      %p117 = scmp.eq.s32.totalorder %s14, 0
      %p118 = por %p116, %p117
      %p119 = scmp.ne.s32.totalorder %s111, %s113
      %p120 = scmp.eq.s32.totalorder %s19, 1
      %p121 = por %p119, %p120
      %p122 = scmp.ne.s32.totalorder %s113, %s114
      %p123 = scmp.eq.s32.totalorder %s19, 0
      %p124 = por %p122, %p123
      %p125 = scmp.ne.s32.totalorder %s113, %s114
      %p126 = scmp.eq.s32.totalorder %s20, 1
      %p127 = por %p125, %p126
      %p129 = scmp.ne.s32.totalorder %s114, %s128
      %p130 = scmp.eq.s32.totalorder %s20, 0
      %p131 = por %p129, %p130
      %s132 = ssub.s32 %s14, %s21
      %p133 = scmp.eq.s32.totalorder %s132, 0
      %s135 = sadd.s32 %s134, 1
      %s136 = scalar_select %p133, %s134, %s135
      %p139 = pneg %p133
      %p140 = scmp.eq.s32.totalorder %s14, 1
      %p141 = por %p139, %p140
      %p142 = scmp.ne.s32.totalorder %s134, %s137
      %p143 = scmp.eq.s32.totalorder %s14, 0
      %p144 = por %p142, %p143
      %p145 = scmp.ne.s32.totalorder %s134, %s137
      %p146 = scmp.eq.s32.totalorder %s19, 1
      %p147 = por %p145, %p146
      %p148 = scmp.ne.s32.totalorder %s137, %s138
      %p149 = scmp.eq.s32.totalorder %s19, 0
      %p150 = por %p148, %p149
      %p151 = scmp.ne.s32.totalorder %s137, %s138
      %p152 = scmp.eq.s32.totalorder %s20, 1
      %p153 = por %p151, %p152
      %p155 = scmp.ne.s32.totalorder %s138, %s154
      %p156 = scmp.eq.s32.totalorder %s20, 0
      %p157 = por %p155, %p156
      %p158 = scmp.le.s32.totalorder 1, %s14
      %p159 = scmp.lt.s32.totalorder %s14, 3
      %p160 = pnand %p158, %p159
      %p161 = pneg %p160
      // Predicated region
      $region9: #{tpu_custom_call.1} parent=5 // pred_check
        _
      $region10: #{tpu_custom_call.1} parent=5 // pred_check_branch
        %163 = sbr.rel (%p160) target = $region12
      $region11: #{tpu_custom_call.1} parent=5 // pred_region
        %s164 = ssub.s32 %s14, 1
        // Predicated region
        $region13: #{tpu_custom_call.1} parent=11 // pred_check
          %p165 = pneg %p61
        $region14: #{tpu_custom_call.1} parent=11 // pred_check_branch
          %167 = sbr.rel (%p165) target = $region16
        $region15: #{tpu_custom_call.1} parent=11 // pred_region
          _
        $region16: #{tpu_custom_call.1} parent=11 // pred_fallthru
          _
        // Predicated region
        $region17: #{tpu_custom_call.1} parent=11 // pred_check
          %p168 = pneg %p82
        $region18: #{tpu_custom_call.1} parent=11 // pred_check_branch
          %170 = sbr.rel (%p168) target = $region20
        $region19: #{tpu_custom_call.1} parent=11 // pred_region
          _
        $region20: #{tpu_custom_call.1} parent=11 // pred_fallthru
          _
        // Predicated region
        $region21: #{tpu_custom_call.1} parent=11 // pred_check
          %p171 = pneg %p103
        $region22: #{tpu_custom_call.1} parent=11 // pred_check_branch
          %173 = sbr.rel (%p171) target = $region24
        $region23: #{tpu_custom_call.1} parent=11 // pred_region
          _
        $region24: #{tpu_custom_call.1} parent=11 // pred_fallthru
          _
        // Predicated region
        $region25: #{tpu_custom_call.1} parent=11 // pred_check
          %p174 = pneg %p124
        $region26: #{tpu_custom_call.1} parent=11 // pred_check_branch
          %176 = sbr.rel (%p174) target = $region28
        $region27: #{tpu_custom_call.1} parent=11 // pred_region
          _
        $region28: #{tpu_custom_call.1} parent=11 // pred_fallthru
          _
      $region12: #{tpu_custom_call.1} parent=5 // pred_fallthru
        _
      %p177 = scmp.lt.s32.totalorder %s14, 2
      // Predicated region
      $region29: #{tpu_custom_call.1} parent=5 // pred_check
        %p178 = pneg %p177
      $region30: #{tpu_custom_call.1} parent=5 // pred_check_branch
        %180 = sbr.rel (%p178) target = $region32
      $region31: #{tpu_custom_call.1} parent=5 // pred_region
        // Predicated region
        $region33: #{tpu_custom_call.1} parent=31 // pred_check
          %p181 = pneg %p34
        $region34: #{tpu_custom_call.1} parent=31 // pred_check_branch
          %183 = sbr.rel (%p181) target = $region36
        $region35: #{tpu_custom_call.1} parent=31 // pred_region
          %p184 = scmp.lt.s32.totalorder %s14, 1
          %s185 = scalar_select %p184, %s14, 1
          %s186 = smul.addr %s185, 4
          %s187 = smul.addr %s186, 8
          %s188 = scalar_lea.vmem %s0, %s187
        $region36: #{tpu_custom_call.1} parent=31 // pred_fallthru
          _
      $region32: #{tpu_custom_call.1} parent=5 // pred_fallthru
        _
      %p189 = scmp.le.s32.totalorder 1, %s14
      %p190 = scmp.lt.s32.totalorder %s14, 3
      %p191 = pnand %p189, %p190
      %p192 = pneg %p191
      // Predicated region
      $region37: #{tpu_custom_call.1} parent=5 // pred_check
        _
      $region38: #{tpu_custom_call.1} parent=5 // pred_check_branch
        %194 = sbr.rel (%p191) target = $region40
      $region39: #{tpu_custom_call.1} parent=5 // pred_region
        %s195 = ssub.s32 %s14, 1
        %p196 = scmp.lt.s32.totalorder %s19, 1
        %s197 = scalar_select %p196, %s19, 1
        %s198 = smul.addr %s197, 4
        %s199 = smul.addr %s198, 8
        %s200 = scalar_lea.vmem %s0, %s199
        %p201 = pneg %p40
        %p202 = pneg %p37
        %p203 = pneg %p61
        %p204 = pneg %p58
        %p205 = pneg %p82
        %p206 = pneg %p79
        %p207 = pneg %p103
        %p208 = pneg %p100
        %p209 = pneg %p124
        %p210 = pneg %p121
        %p211 = pneg %p150
        %p212 = pneg %p147
        %s213 = sand.u32 %s137, 1
        %s214 = scalar_lea.sflag [#allocation5], %s213
        %s215 = sand.u32 %s137, 1
        %s216 = smul.addr %s215, 8
        %s217 = scalar_lea.vmem [#allocation4], %s216
        %p218 = scmp.lt.s32.totalorder %s19, 1
        %s219 = scalar_select %p218, %s19, 1
        %s220 = smul.addr %s219, 4
        %s221 = smul.addr %s220, 8
        %s222 = scalar_lea.vmem %s0, %s221
        %224 = vst [vmem:[#allocation2] sm:$0xff] 0.0
        %225 = vst [vmem:[#allocation2 + $0x8] sm:$0xff] 0.0
        %226 = vst [vmem:[#allocation2 + $0x10] sm:$0xff] 0.0
        %v227 = vld [vmem:[%s222] sm:$0xff]
        %vm228 = vcmask 588800
        %229 = vst.msk [vmem:[#allocation2] sm:$0xff] %vm228, %v227
        %s230 = scalar_lea.vmem %s222, 16
        %v231 = vld [vmem:[%s230] sm:$0xff]
        %232 = vst.msk [vmem:[#allocation2 + $0x8] sm:$0xff] %vm228, %v231
        %v233 = vld [vmem:[%s222 + $0x1] sm:$0xff]
        %234 = vst.msk [vmem:[#allocation2 + $0x10] sm:$0xff] %vm228, %v233
        %v235 = vld [vmem:[#allocation2] sm:$0xff]
        %v236 = vld [vmem:[#allocation2 + $0x8] sm:$0xff]
        %v237 = vld [vmem:[#allocation2 + $0x10] sm:$0xff]
        %v238 = vpack.c.bf16 %v235, %v235
        %v239 = vpack.c.bf16 %v236, %v236
        %v240 = vpack.c.bf16 %v237, %v237
        %v241 = vld [vmem:[%s1] sm:$0xf]
        %v242 = vld [vmem:[%s1 + $0x4] sm:$0xf]
        %v243 = vld [vmem:[%s1 + $0x8] sm:$0xf]
        %v244 = vld [vmem:[%s1 + $0xc] sm:$0xf]
        %v245 = vld [vmem:[%s1 + $0x10] sm:$0xf]
        %v246 = vld [vmem:[%s1 + $0x14] sm:$0xf]
        %v247 = vld [vmem:[%s1 + $0x18] sm:$0xf]
        %v248 = vld [vmem:[%s1 + $0x1c] sm:$0xf]
        %v249 = vld [vmem:[%s1 + $0x20] sm:$0xf]
        %v250 = vld [vmem:[%s1 + $0x24] sm:$0xf]
        %v251 = vld [vmem:[%s1 + $0x28] sm:$0xf]
        %v252 = vld [vmem:[%s1 + $0x2c] sm:$0xf]
        %v253 = vld [vmem:[%s1 + $0x30] sm:$0xf]
        %v254 = vld [vmem:[%s1 + $0x34] sm:$0xf]
        %v255 = vld [vmem:[%s1 + $0x38] sm:$0xf]
        %v256 = vld [vmem:[%s1 + $0x3c] sm:$0xf]
        %v257 = vld [vmem:[%s1 + $0x40] sm:$0xf]
        %v258 = vld [vmem:[%s1 + $0x44] sm:$0xf]
        %v259 = vld [vmem:[%s1 + $0x48] sm:$0xf]
        %v260 = vld [vmem:[%s1 + $0x4c] sm:$0xf]
        %v261 = vld [vmem:[%s1 + $0x50] sm:$0xf]
        %v262 = vld [vmem:[%s1 + $0x54] sm:$0xf]
        %v263 = vld [vmem:[%s1 + $0x58] sm:$0xf]
        %v264 = vld [vmem:[%s1 + $0x5c] sm:$0xf]
        %v265 = vld [vmem:[%s1 + $0x60] sm:$0xf]
        %v266 = vld [vmem:[%s1 + $0x64] sm:$0xf]
        %v267 = vld [vmem:[%s1 + $0x68] sm:$0xf]
        %v268 = vld [vmem:[%s1 + $0x6c] sm:$0xf]
        %v269 = vld [vmem:[%s1 + $0x70] sm:$0xf]
        %v270 = vld [vmem:[%s1 + $0x74] sm:$0xf]
        %v271 = vld [vmem:[%s1 + $0x78] sm:$0xf]
        %v272 = vld [vmem:[%s1 + $0x7c] sm:$0xf]
        %v273 = vld [vmem:[%s1 + $0x80] sm:$0xf]
        %v274 = vld [vmem:[%s1 + $0x84] sm:$0xf]
        %v275 = vld [vmem:[%s1 + $0x88] sm:$0xf]
        %v276 = vld [vmem:[%s1 + $0x8c] sm:$0xf]
        %v277 = vld [vmem:[%s1 + $0x90] sm:$0xf]
        %v278 = vld [vmem:[%s1 + $0x94] sm:$0xf]
        %v279 = vld [vmem:[%s1 + $0x98] sm:$0xf]
        %v280 = vld [vmem:[%s1 + $0x9c] sm:$0xf]
        %v281 = vld [vmem:[%s1 + $0xa0] sm:$0xf]
        %v282 = vld [vmem:[%s1 + $0xa4] sm:$0xf]
        %v283 = vld [vmem:[%s1 + $0xa8] sm:$0xf]
        %v284 = vld [vmem:[%s1 + $0xac] sm:$0xf]
        %v285 = vld [vmem:[%s1 + $0xb0] sm:$0xf]
        %v286 = vld [vmem:[%s1 + $0xb4] sm:$0xf]
        %v287 = vld [vmem:[%s1 + $0xb8] sm:$0xf]
        %v288 = vld [vmem:[%s1 + $0xbc] sm:$0xf]
        %v289 = vld [vmem:[%s2] sm:$0x1]
        %v291 = vlaneseq
        %v292 = vshrl.u32 %v291, 7
        %v293 = vsub.s32 0, %v292
        %v294 = vrot.slane %v289, %v293
        %v344 = vunpack.c.l.b16 %v241
        %v345 = vunpack.c.l.b16 %v242
        %v346 = vunpack.c.l.b16 %v243
        %v347 = vunpack.c.l.b16 %v244
        %v348 = vunpack.c.l.b16 %v245
        %v349 = vunpack.c.l.b16 %v246
        %v350 = vunpack.c.l.b16 %v247
        %v351 = vunpack.c.l.b16 %v248
        %v352 = vunpack.c.l.b16 %v249
        %v353 = vunpack.c.l.b16 %v250
        %v354 = vunpack.c.l.b16 %v251
        %v355 = vunpack.c.l.b16 %v252
        %v356 = vunpack.c.l.b16 %v253
        %v357 = vunpack.c.l.b16 %v254
        %v358 = vunpack.c.l.b16 %v255
        %v359 = vunpack.c.l.b16 %v256
        %v360 = vunpack.c.l.b16 %v257
        %v361 = vunpack.c.l.b16 %v258
        %v362 = vunpack.c.l.b16 %v259
        %v363 = vunpack.c.l.b16 %v260
        %v364 = vunpack.c.l.b16 %v261
        %v365 = vunpack.c.l.b16 %v262
        %v366 = vunpack.c.l.b16 %v263
        %v367 = vunpack.c.l.b16 %v264
        %v368 = vunpack.c.l.b16 %v265
        %v369 = vunpack.c.l.b16 %v266
        %v370 = vunpack.c.l.b16 %v267
        %v371 = vunpack.c.l.b16 %v268
        %v372 = vunpack.c.l.b16 %v269
        %v373 = vunpack.c.l.b16 %v270
        %v374 = vunpack.c.l.b16 %v271
        %v375 = vunpack.c.l.b16 %v272
        %v376 = vunpack.c.l.b16 %v273
        %v377 = vunpack.c.l.b16 %v274
        %v378 = vunpack.c.l.b16 %v275
        %v379 = vunpack.c.l.b16 %v276
        %v380 = vunpack.c.l.b16 %v277
        %v381 = vunpack.c.l.b16 %v278
        %v382 = vunpack.c.l.b16 %v279
        %v383 = vunpack.c.l.b16 %v280
        %v384 = vunpack.c.l.b16 %v281
        %v385 = vunpack.c.l.b16 %v282
        %v386 = vunpack.c.l.b16 %v283
        %v387 = vunpack.c.l.b16 %v284
        %v388 = vunpack.c.l.b16 %v285
        %v389 = vunpack.c.l.b16 %v286
        %v390 = vunpack.c.l.b16 %v287
        %v391 = vunpack.c.l.b16 %v288
        %v392 = vpack.c.b16 %v345, %v344
        %v393 = vpack.c.b16 %v347, %v346
        %v394 = vpack.c.b16 %v349, %v348
        %v395 = vpack.c.b16 %v351, %v350
        %v396 = vpack.c.b16 %v353, %v352
        %v397 = vpack.c.b16 %v355, %v354
        %v398 = vpack.c.b16 %v357, %v356
        %v399 = vpack.c.b16 %v359, %v358
        %v400 = vpack.c.b16 %v361, %v360
        %v401 = vpack.c.b16 %v363, %v362
        %v402 = vpack.c.b16 %v365, %v364
        %v403 = vpack.c.b16 %v367, %v366
        %v404 = vpack.c.b16 %v369, %v368
        %v405 = vpack.c.b16 %v371, %v370
        %v406 = vpack.c.b16 %v373, %v372
        %v407 = vpack.c.b16 %v375, %v374
        %v408 = vpack.c.b16 %v377, %v376
        %v409 = vpack.c.b16 %v379, %v378
        %v410 = vpack.c.b16 %v381, %v380
        %v411 = vpack.c.b16 %v383, %v382
        %v412 = vpack.c.b16 %v385, %v384
        %v413 = vpack.c.b16 %v387, %v386
        %v414 = vpack.c.b16 %v389, %v388
        %v415 = vpack.c.b16 %v391, %v390
        %440 = vmatprep.subr.bf16.mxu0 0
        %441 = vmatpush1.bf16.msra.mxu0 %v392
        %442 = vmatprep.subr.bf16.mxu0 0
        %443 = vmatpush1.bf16.msra.mxu0 %v393
        %444 = vmatprep.subr.bf16.mxu0 0
        %445 = vmatpush1.bf16.msra.mxu0 %v394
        %446 = vmatprep.subr.bf16.mxu0 0
        %447 = vmatpush1.bf16.msra.mxu0 %v395
        %448 = vmatprep.subr.bf16.mxu0 0
        %449 = vmatpush1.bf16.msra.mxu0 %v396
        %450 = vmatprep.subr.bf16.mxu0 0
        %451 = vmatpush1.bf16.msra.mxu0 %v397
        %452 = vmatprep.subr.bf16.mxu0 0
        %453 = vmatpush1.bf16.msra.mxu0 %v398
        %454 = vmatprep.subr.bf16.mxu0 0
        %455 = vmatpush1.bf16.msra.mxu0 %v399
        %456 = vmatprep.subr.bf16.mxu0 0
        %457 = vmatpush1.bf16.msra.mxu0 %v400
        %458 = vmatprep.subr.bf16.mxu0 0
        %459 = vmatpush1.bf16.msra.mxu0 %v401
        %460 = vmatprep.subr.bf16.mxu0 0
        %461 = vmatpush1.bf16.msra.mxu0 %v402
        %462 = vmatprep.subr.bf16.mxu0 0
        %463 = vmatpush1.bf16.msra.mxu0 %v403
        %464 = vmatprep.subr.bf16.mxu0 0
        %465 = vmatpush1.bf16.msra.mxu0 %v404
        %466 = vmatprep.subr.bf16.mxu0 0
        %467 = vmatpush1.bf16.msra.mxu0 %v405
        %468 = vmatprep.subr.bf16.mxu0 0
        %469 = vmatpush1.bf16.msra.mxu0 %v406
        %470 = vmatprep.subr.bf16.mxu0 0
        %471 = vmatpush1.bf16.msra.mxu0 %v407
        %472 = vmatprep.mubr.bf16.mxu0 %v239
        %473 = vmatmul.mubr.bf16.gmra.mrb[0].mxu0 %v238
        %v474 = vpop.f32.mrb[0].mxu0
        %v475 = vadd.f32 %v294, %v474
        %v476 = vpop.f32.mrb[0].mxu0
        %v477 = vpop.f32.mrb[0].mxu0
        %v478 = vpop.f32.mrb[0].mxu0
        %479 = vdwg.mxu0
        %480 = vmatprep.subr.bf16.mxu0 0
        %481 = vmatpush1.bf16.msra.mxu0 %v408
        %482 = vmatprep.subr.bf16.mxu0 0
        %483 = vmatpush1.bf16.msra.mxu0 %v409
        %484 = vmatprep.subr.bf16.mxu0 0
        %485 = vmatpush1.bf16.msra.mxu0 %v410
        %486 = vmatprep.subr.bf16.mxu0 0
        %487 = vmatpush1.bf16.msra.mxu0 %v411
        %488 = vmatprep.subr.bf16.mxu0 0
        %489 = vmatpush1.bf16.msra.mxu0 %v412
        %490 = vmatprep.subr.bf16.mxu0 0
        %491 = vmatpush1.bf16.msra.mxu0 %v413
        %492 = vmatprep.subr.bf16.mxu0 0
        %493 = vmatpush1.bf16.msra.mxu0 %v414
        %494 = vmatprep.subr.bf16.mxu0 0
        %495 = vmatpush1.bf16.msra.mxu0 %v415
        %496 = vmatprep.subr.bf16.mxu0 0
        %497 = vmatpush1.bf16.msra.mxu0 0
        %498 = vmatprep.subr.bf16.mxu0 0
        %499 = vmatpush1.bf16.msra.mxu0 0
        %500 = vmatprep.subr.bf16.mxu0 0
        %501 = vmatpush1.bf16.msra.mxu0 0
        %502 = vmatprep.subr.bf16.mxu0 0
        %503 = vmatpush1.bf16.msra.mxu0 0
        %504 = vmatprep.subr.bf16.mxu0 0
        %505 = vmatpush1.bf16.msra.mxu0 0
        %506 = vmatprep.subr.bf16.mxu0 0
        %507 = vmatpush1.bf16.msra.mxu0 0
        %508 = vmatprep.subr.bf16.mxu0 0
        %509 = vmatpush1.bf16.msra.mxu0 0
        %510 = vmatprep.subr.bf16.mxu0 0
        %511 = vmatpush1.bf16.msra.mxu0 0
        %512 = vmatprep.mubr.bf16.mxu0 0
        %513 = vmatmul.mubr.bf16.gmra.mrb[0].mxu0 %v240
        %v514 = vpop.f32.mrb[0].mxu0
        %v515 = vadd.f32 %v475, %v514
        %v516 = vpop.f32.mrb[0].mxu0
        %v517 = vpop.f32.mrb[0].mxu0
        %v518 = vpop.f32.mrb[0].mxu0
        %519 = vdwg.mxu0
        %v520 = vmul.f32 %v515, 0.01
        %v521 = vmax.f32 %v515, %v520
        %vm522 = vcmask 523264
        %523 = vst.msk [vmem:[#allocation3 + $0x1] sm:$0xff] %vm522, %v521
        %vm524 = vcmask 517121
        %525 = vst.msk [vmem:[#allocation3 - $0x1] sm:$0x2] %vm524, %v521
        %vm526 = vcmask 522246
        %527 = vst.msk [vmem:[#allocation3 + $0x3] sm:$0x40] %vm526, %v521
        %v528 = vld [vmem:[#allocation3] sm:$0xff]
        %v529 = vld [vmem:[#allocation3 + $0x8] sm:$0x3]
        %532 = vrot.lane.b32.xlu0 %v528, 56
        %v533 = vpop.permute.xlu0 %532
        %534 = vrot.lane.b32.xlu0 %v529, 56
        %v535 = vpop.permute.xlu0 %534
        %vm538 = vcmask 589312
        %539 = vst.msk [vmem:[#allocation3] sm:$0xff] %vm538, %v533
        %vm540 = vcmask 583168
        %541 = vst.msk [vmem:[#allocation3 + $0x8] sm:$0x3] %vm540, %v535
        %v542 = vld [vmem:[#allocation3] sm:$0xff]
        %v543 = vld [vmem:[#allocation3 + $0x8] sm:$0x3]
        %546 = vrot.lane.b32.xlu0 %v542, 24
        %v547 = vpop.permute.xlu0 %546
        %548 = vrot.lane.b32.xlu0 %v543, 24
        %v549 = vpop.permute.xlu0 %548
        %vm552 = vcmask 654912
        %553 = vst.msk [vmem:[#allocation3] sm:$0xff] %vm552, %v547
        %vm554 = vcmask 648768
        %555 = vst.msk [vmem:[#allocation3 + $0x8] sm:$0x3] %vm554, %v549
        %v556 = vld [vmem:[#allocation3] sm:$0xff]
        %vm557 = vcmask 654336
        %558 = vst.msk [vmem:[#allocation2] sm:$0xff] %vm557, %v556
        %v559 = vld [vmem:[#allocation3 + $0x1] sm:$0xff]
        %560 = vst.msk [vmem:[#allocation2 + $0x8] sm:$0xff] %vm557, %v559
        %v561 = vld [vmem:[#allocation3 + $0x2] sm:$0xff]
        %562 = vst.msk [vmem:[#allocation2 + $0x10] sm:$0xff] %vm557, %v561
        %v563 = vld [vmem:[#allocation2] sm:$0xff]
        %v564 = vld [vmem:[#allocation2 + $0x8] sm:$0xff]
        %v565 = vld [vmem:[#allocation2 + $0x10] sm:$0xff]
        %v566 = vpack.c.bf16 %v563, %v563
        %v567 = vpack.c.bf16 %v564, %v564
        %v568 = vpack.c.bf16 %v565, %v565
        %v569 = vld [vmem:[%s3] sm:$0xf]
        %v570 = vld [vmem:[%s3 + $0x4] sm:$0xf]
        %v571 = vld [vmem:[%s3 + $0x8] sm:$0xf]
        %v572 = vld [vmem:[%s3 + $0xc] sm:$0xf]
        %v573 = vld [vmem:[%s3 + $0x10] sm:$0xf]
        %v574 = vld [vmem:[%s3 + $0x14] sm:$0xf]
        %v575 = vld [vmem:[%s3 + $0x18] sm:$0xf]
        %v576 = vld [vmem:[%s3 + $0x1c] sm:$0xf]
        %v577 = vld [vmem:[%s3 + $0x20] sm:$0xf]
        %v578 = vld [vmem:[%s3 + $0x24] sm:$0xf]
        %v579 = vld [vmem:[%s3 + $0x28] sm:$0xf]
        %v580 = vld [vmem:[%s3 + $0x2c] sm:$0xf]
        %v581 = vld [vmem:[%s3 + $0x30] sm:$0xf]
        %v582 = vld [vmem:[%s3 + $0x34] sm:$0xf]
        %v583 = vld [vmem:[%s3 + $0x38] sm:$0xf]
        %v584 = vld [vmem:[%s3 + $0x3c] sm:$0xf]
        %v585 = vld [vmem:[%s3 + $0x40] sm:$0xf]
        %v586 = vld [vmem:[%s3 + $0x44] sm:$0xf]
        %v587 = vld [vmem:[%s3 + $0x48] sm:$0xf]
        %v588 = vld [vmem:[%s3 + $0x4c] sm:$0xf]
        %v589 = vld [vmem:[%s3 + $0x50] sm:$0xf]
        %v590 = vld [vmem:[%s3 + $0x54] sm:$0xf]
        %v591 = vld [vmem:[%s3 + $0x58] sm:$0xf]
        %v592 = vld [vmem:[%s3 + $0x5c] sm:$0xf]
        %v593 = vld [vmem:[%s3 + $0x60] sm:$0xf]
        %v594 = vld [vmem:[%s3 + $0x64] sm:$0xf]
        %v595 = vld [vmem:[%s3 + $0x68] sm:$0xf]
        %v596 = vld [vmem:[%s3 + $0x6c] sm:$0xf]
        %v597 = vld [vmem:[%s3 + $0x70] sm:$0xf]
        %v598 = vld [vmem:[%s3 + $0x74] sm:$0xf]
        %v599 = vld [vmem:[%s3 + $0x78] sm:$0xf]
        %v600 = vld [vmem:[%s3 + $0x7c] sm:$0xf]
        %v601 = vld [vmem:[%s3 + $0x80] sm:$0xf]
        %v602 = vld [vmem:[%s3 + $0x84] sm:$0xf]
        %v603 = vld [vmem:[%s3 + $0x88] sm:$0xf]
        %v604 = vld [vmem:[%s3 + $0x8c] sm:$0xf]
        %v605 = vld [vmem:[%s3 + $0x90] sm:$0xf]
        %v606 = vld [vmem:[%s3 + $0x94] sm:$0xf]
        %v607 = vld [vmem:[%s3 + $0x98] sm:$0xf]
        %v608 = vld [vmem:[%s3 + $0x9c] sm:$0xf]
        %v609 = vld [vmem:[%s3 + $0xa0] sm:$0xf]
        %v610 = vld [vmem:[%s3 + $0xa4] sm:$0xf]
        %v611 = vld [vmem:[%s3 + $0xa8] sm:$0xf]
        %v612 = vld [vmem:[%s3 + $0xac] sm:$0xf]
        %v613 = vld [vmem:[%s3 + $0xb0] sm:$0xf]
        %v614 = vld [vmem:[%s3 + $0xb4] sm:$0xf]
        %v615 = vld [vmem:[%s3 + $0xb8] sm:$0xf]
        %v616 = vld [vmem:[%s3 + $0xbc] sm:$0xf]
        %v617 = vld [vmem:[%s4] sm:$0x1]
        %v619 = vlaneseq
        %v620 = vshrl.u32 %v619, 7
        %v621 = vsub.s32 0, %v620
        %v622 = vrot.slane %v617, %v621
        %v672 = vunpack.c.l.b16 %v569
        %v673 = vunpack.c.l.b16 %v570
        %v674 = vunpack.c.l.b16 %v571
        %v675 = vunpack.c.l.b16 %v572
        %v676 = vunpack.c.l.b16 %v573
        %v677 = vunpack.c.l.b16 %v574
        %v678 = vunpack.c.l.b16 %v575
        %v679 = vunpack.c.l.b16 %v576
        %v680 = vunpack.c.l.b16 %v577
        %v681 = vunpack.c.l.b16 %v578
        %v682 = vunpack.c.l.b16 %v579
        %v683 = vunpack.c.l.b16 %v580
        %v684 = vunpack.c.l.b16 %v581
        %v685 = vunpack.c.l.b16 %v582
        %v686 = vunpack.c.l.b16 %v583
        %v687 = vunpack.c.l.b16 %v584
        %v688 = vunpack.c.l.b16 %v585
        %v689 = vunpack.c.l.b16 %v586
        %v690 = vunpack.c.l.b16 %v587
        %v691 = vunpack.c.l.b16 %v588
        %v692 = vunpack.c.l.b16 %v589
        %v693 = vunpack.c.l.b16 %v590
        %v694 = vunpack.c.l.b16 %v591
        %v695 = vunpack.c.l.b16 %v592
        %v696 = vunpack.c.l.b16 %v593
        %v697 = vunpack.c.l.b16 %v594
        %v698 = vunpack.c.l.b16 %v595
        %v699 = vunpack.c.l.b16 %v596
        %v700 = vunpack.c.l.b16 %v597
        %v701 = vunpack.c.l.b16 %v598
        %v702 = vunpack.c.l.b16 %v599
        %v703 = vunpack.c.l.b16 %v600
        %v704 = vunpack.c.l.b16 %v601
        %v705 = vunpack.c.l.b16 %v602
        %v706 = vunpack.c.l.b16 %v603
        %v707 = vunpack.c.l.b16 %v604
        %v708 = vunpack.c.l.b16 %v605
        %v709 = vunpack.c.l.b16 %v606
        %v710 = vunpack.c.l.b16 %v607
        %v711 = vunpack.c.l.b16 %v608
        %v712 = vunpack.c.l.b16 %v609
        %v713 = vunpack.c.l.b16 %v610
        %v714 = vunpack.c.l.b16 %v611
        %v715 = vunpack.c.l.b16 %v612
        %v716 = vunpack.c.l.b16 %v613
        %v717 = vunpack.c.l.b16 %v614
        %v718 = vunpack.c.l.b16 %v615
        %v719 = vunpack.c.l.b16 %v616
        %v720 = vpack.c.b16 %v673, %v672
        %v721 = vpack.c.b16 %v675, %v674
        %v722 = vpack.c.b16 %v677, %v676
        %v723 = vpack.c.b16 %v679, %v678
        %v724 = vpack.c.b16 %v681, %v680
        %v725 = vpack.c.b16 %v683, %v682
        %v726 = vpack.c.b16 %v685, %v684
        %v727 = vpack.c.b16 %v687, %v686
        %v728 = vpack.c.b16 %v689, %v688
        %v729 = vpack.c.b16 %v691, %v690
        %v730 = vpack.c.b16 %v693, %v692
        %v731 = vpack.c.b16 %v695, %v694
        %v732 = vpack.c.b16 %v697, %v696
        %v733 = vpack.c.b16 %v699, %v698
        %v734 = vpack.c.b16 %v701, %v700
        %v735 = vpack.c.b16 %v703, %v702
        %v736 = vpack.c.b16 %v705, %v704
        %v737 = vpack.c.b16 %v707, %v706
        %v738 = vpack.c.b16 %v709, %v708
        %v739 = vpack.c.b16 %v711, %v710
        %v740 = vpack.c.b16 %v713, %v712
        %v741 = vpack.c.b16 %v715, %v714
        %v742 = vpack.c.b16 %v717, %v716
        %v743 = vpack.c.b16 %v719, %v718
        %768 = vmatprep.subr.bf16.mxu0 0
        %769 = vmatpush1.bf16.msra.mxu0 %v720
        %770 = vmatprep.subr.bf16.mxu0 0
        %771 = vmatpush1.bf16.msra.mxu0 %v721
        %772 = vmatprep.subr.bf16.mxu0 0
        %773 = vmatpush1.bf16.msra.mxu0 %v722
        %774 = vmatprep.subr.bf16.mxu0 0
        %775 = vmatpush1.bf16.msra.mxu0 %v723
        %776 = vmatprep.subr.bf16.mxu0 0
        %777 = vmatpush1.bf16.msra.mxu0 %v724
        %778 = vmatprep.subr.bf16.mxu0 0
        %779 = vmatpush1.bf16.msra.mxu0 %v725
        %780 = vmatprep.subr.bf16.mxu0 0
        %781 = vmatpush1.bf16.msra.mxu0 %v726
        %782 = vmatprep.subr.bf16.mxu0 0
        %783 = vmatpush1.bf16.msra.mxu0 %v727
        %784 = vmatprep.subr.bf16.mxu0 0
        %785 = vmatpush1.bf16.msra.mxu0 %v728
        %786 = vmatprep.subr.bf16.mxu0 0
        %787 = vmatpush1.bf16.msra.mxu0 %v729
        %788 = vmatprep.subr.bf16.mxu0 0
        %789 = vmatpush1.bf16.msra.mxu0 %v730
        %790 = vmatprep.subr.bf16.mxu0 0
        %791 = vmatpush1.bf16.msra.mxu0 %v731
        %792 = vmatprep.subr.bf16.mxu0 0
        %793 = vmatpush1.bf16.msra.mxu0 %v732
        %794 = vmatprep.subr.bf16.mxu0 0
        %795 = vmatpush1.bf16.msra.mxu0 %v733
        %796 = vmatprep.subr.bf16.mxu0 0
        %797 = vmatpush1.bf16.msra.mxu0 %v734
        %798 = vmatprep.subr.bf16.mxu0 0
        %799 = vmatpush1.bf16.msra.mxu0 %v735
        %800 = vmatprep.mubr.bf16.mxu0 %v567
        %801 = vmatmul.mubr.bf16.gmra.mrb[0].mxu0 %v566
        %v802 = vpop.f32.mrb[0].mxu0
        %v803 = vadd.f32 %v622, %v802
        %v804 = vpop.f32.mrb[0].mxu0
        %v805 = vpop.f32.mrb[0].mxu0
        %v806 = vpop.f32.mrb[0].mxu0
        %807 = vdwg.mxu0
        %808 = vmatprep.subr.bf16.mxu0 0
        %809 = vmatpush1.bf16.msra.mxu0 %v736
        %810 = vmatprep.subr.bf16.mxu0 0
        %811 = vmatpush1.bf16.msra.mxu0 %v737
        %812 = vmatprep.subr.bf16.mxu0 0
        %813 = vmatpush1.bf16.msra.mxu0 %v738
        %814 = vmatprep.subr.bf16.mxu0 0
        %815 = vmatpush1.bf16.msra.mxu0 %v739
        %816 = vmatprep.subr.bf16.mxu0 0
        %817 = vmatpush1.bf16.msra.mxu0 %v740
        %818 = vmatprep.subr.bf16.mxu0 0
        %819 = vmatpush1.bf16.msra.mxu0 %v741
        %820 = vmatprep.subr.bf16.mxu0 0
        %821 = vmatpush1.bf16.msra.mxu0 %v742
        %822 = vmatprep.subr.bf16.mxu0 0
        %823 = vmatpush1.bf16.msra.mxu0 %v743
        %824 = vmatprep.subr.bf16.mxu0 0
        %825 = vmatpush1.bf16.msra.mxu0 0
        %826 = vmatprep.subr.bf16.mxu0 0
        %827 = vmatpush1.bf16.msra.mxu0 0
        %828 = vmatprep.subr.bf16.mxu0 0
        %829 = vmatpush1.bf16.msra.mxu0 0
        %830 = vmatprep.subr.bf16.mxu0 0
        %831 = vmatpush1.bf16.msra.mxu0 0
        %832 = vmatprep.subr.bf16.mxu0 0
        %833 = vmatpush1.bf16.msra.mxu0 0
        %834 = vmatprep.subr.bf16.mxu0 0
        %835 = vmatpush1.bf16.msra.mxu0 0
        %836 = vmatprep.subr.bf16.mxu0 0
        %837 = vmatpush1.bf16.msra.mxu0 0
        %838 = vmatprep.subr.bf16.mxu0 0
        %839 = vmatpush1.bf16.msra.mxu0 0
        %840 = vmatprep.mubr.bf16.mxu0 0
        %841 = vmatmul.mubr.bf16.gmra.mrb[0].mxu0 %v568
        %v842 = vpop.f32.mrb[0].mxu0
        %v843 = vadd.f32 %v803, %v842
        %v844 = vpop.f32.mrb[0].mxu0
        %v845 = vpop.f32.mrb[0].mxu0
        %v846 = vpop.f32.mrb[0].mxu0
        %847 = vdwg.mxu0
        %v848 = vmul.f32 %v843, 0.01
        %v849 = vmax.f32 %v843, %v848
        %850 = vst.msk [vmem:[#allocation3 + $0x1] sm:$0xff] %vm522, %v849
        %851 = vst.msk [vmem:[#allocation3 - $0x1] sm:$0x2] %vm524, %v849
        %852 = vst.msk [vmem:[#allocation3 + $0x3] sm:$0x40] %vm526, %v849
        %v853 = vld [vmem:[#allocation3] sm:$0xff]
        %v854 = vld [vmem:[#allocation3 + $0x8] sm:$0x3]
        %857 = vrot.lane.b32.xlu0 %v853, 56
        %v858 = vpop.permute.xlu0 %857
        %859 = vrot.lane.b32.xlu0 %v854, 56
        %v860 = vpop.permute.xlu0 %859
        %863 = vst.msk [vmem:[#allocation3] sm:$0xff] %vm538, %v858
        %864 = vst.msk [vmem:[#allocation3 + $0x8] sm:$0x3] %vm540, %v860
        %v865 = vld [vmem:[#allocation3] sm:$0xff]
        %v866 = vld [vmem:[#allocation3 + $0x8] sm:$0x3]
        %869 = vrot.lane.b32.xlu0 %v865, 24
        %v870 = vpop.permute.xlu0 %869
        %871 = vrot.lane.b32.xlu0 %v866, 24
        %v872 = vpop.permute.xlu0 %871
        %875 = vst.msk [vmem:[#allocation3] sm:$0xff] %vm552, %v870
        %876 = vst.msk [vmem:[#allocation3 + $0x8] sm:$0x3] %vm554, %v872
        %v877 = vld [vmem:[#allocation3] sm:$0xff]
        %878 = vst.msk [vmem:[#allocation2] sm:$0xff] %vm557, %v877
        %v879 = vld [vmem:[#allocation3 + $0x1] sm:$0xff]
        %880 = vst.msk [vmem:[#allocation2 + $0x8] sm:$0xff] %vm557, %v879
        %v881 = vld [vmem:[#allocation3 + $0x2] sm:$0xff]
        %882 = vst.msk [vmem:[#allocation2 + $0x10] sm:$0xff] %vm557, %v881
        %v883 = vld [vmem:[#allocation2] sm:$0xff]
        %v884 = vld [vmem:[#allocation2 + $0x8] sm:$0xff]
        %v885 = vld [vmem:[#allocation2 + $0x10] sm:$0xff]
        %v886 = vpack.c.bf16 %v883, %v883
        %v887 = vpack.c.bf16 %v884, %v884
        %v888 = vpack.c.bf16 %v885, %v885
        %s889 = scalar_lea.vmem %s3, 192
        %v890 = vld [vmem:[%s889] sm:$0xf]
        %v891 = vld [vmem:[%s889 + $0x4] sm:$0xf]
        %v892 = vld [vmem:[%s889 + $0x8] sm:$0xf]
        %v893 = vld [vmem:[%s889 + $0xc] sm:$0xf]
        %v894 = vld [vmem:[%s889 + $0x10] sm:$0xf]
        %v895 = vld [vmem:[%s889 + $0x14] sm:$0xf]
        %v896 = vld [vmem:[%s889 + $0x18] sm:$0xf]
        %v897 = vld [vmem:[%s889 + $0x1c] sm:$0xf]
        %v898 = vld [vmem:[%s889 + $0x20] sm:$0xf]
        %v899 = vld [vmem:[%s889 + $0x24] sm:$0xf]
        %v900 = vld [vmem:[%s889 + $0x28] sm:$0xf]
        %v901 = vld [vmem:[%s889 + $0x2c] sm:$0xf]
        %v902 = vld [vmem:[%s889 + $0x30] sm:$0xf]
        %v903 = vld [vmem:[%s889 + $0x34] sm:$0xf]
        %v904 = vld [vmem:[%s889 + $0x38] sm:$0xf]
        %v905 = vld [vmem:[%s889 + $0x3c] sm:$0xf]
        %v906 = vld [vmem:[%s889 + $0x40] sm:$0xf]
        %v907 = vld [vmem:[%s889 + $0x44] sm:$0xf]
        %v908 = vld [vmem:[%s889 + $0x48] sm:$0xf]
        %v909 = vld [vmem:[%s889 + $0x4c] sm:$0xf]
        %v910 = vld [vmem:[%s889 + $0x50] sm:$0xf]
        %v911 = vld [vmem:[%s889 + $0x54] sm:$0xf]
        %v912 = vld [vmem:[%s889 + $0x58] sm:$0xf]
        %v913 = vld [vmem:[%s889 + $0x5c] sm:$0xf]
        %v914 = vld [vmem:[%s889 + $0x60] sm:$0xf]
        %v915 = vld [vmem:[%s889 + $0x64] sm:$0xf]
        %v916 = vld [vmem:[%s889 + $0x68] sm:$0xf]
        %v917 = vld [vmem:[%s889 + $0x6c] sm:$0xf]
        %v918 = vld [vmem:[%s889 + $0x70] sm:$0xf]
        %v919 = vld [vmem:[%s889 + $0x74] sm:$0xf]
        %v920 = vld [vmem:[%s889 + $0x78] sm:$0xf]
        %v921 = vld [vmem:[%s889 + $0x7c] sm:$0xf]
        %v922 = vld [vmem:[%s889 + $0x80] sm:$0xf]
        %v923 = vld [vmem:[%s889 + $0x84] sm:$0xf]
        %v924 = vld [vmem:[%s889 + $0x88] sm:$0xf]
        %v925 = vld [vmem:[%s889 + $0x8c] sm:$0xf]
        %v926 = vld [vmem:[%s889 + $0x90] sm:$0xf]
        %v927 = vld [vmem:[%s889 + $0x94] sm:$0xf]
        %v928 = vld [vmem:[%s889 + $0x98] sm:$0xf]
        %v929 = vld [vmem:[%s889 + $0x9c] sm:$0xf]
        %v930 = vld [vmem:[%s889 + $0xa0] sm:$0xf]
        %v931 = vld [vmem:[%s889 + $0xa4] sm:$0xf]
        %v932 = vld [vmem:[%s889 + $0xa8] sm:$0xf]
        %v933 = vld [vmem:[%s889 + $0xac] sm:$0xf]
        %v934 = vld [vmem:[%s889 + $0xb0] sm:$0xf]
        %v935 = vld [vmem:[%s889 + $0xb4] sm:$0xf]
        %v936 = vld [vmem:[%s889 + $0xb8] sm:$0xf]
        %v937 = vld [vmem:[%s889 + $0xbc] sm:$0xf]
        %s938 = scalar_lea.vmem %s4, 1
        %v939 = vld [vmem:[%s938] sm:$0x1]
        %v941 = vlaneseq
        %v942 = vshrl.u32 %v941, 7
        %v943 = vsub.s32 0, %v942
        %v944 = vrot.slane %v939, %v943
        %v994 = vunpack.c.l.b16 %v890
        %v995 = vunpack.c.l.b16 %v891
        %v996 = vunpack.c.l.b16 %v892
        %v997 = vunpack.c.l.b16 %v893
        %v998 = vunpack.c.l.b16 %v894
        %v999 = vunpack.c.l.b16 %v895
        %v1000 = vunpack.c.l.b16 %v896
        %v1001 = vunpack.c.l.b16 %v897
        %v1002 = vunpack.c.l.b16 %v898
        %v1003 = vunpack.c.l.b16 %v899
        %v1004 = vunpack.c.l.b16 %v900
        %v1005 = vunpack.c.l.b16 %v901
        %v1006 = vunpack.c.l.b16 %v902
        %v1007 = vunpack.c.l.b16 %v903
        %v1008 = vunpack.c.l.b16 %v904
        %v1009 = vunpack.c.l.b16 %v905
        %v1010 = vunpack.c.l.b16 %v906
        %v1011 = vunpack.c.l.b16 %v907
        %v1012 = vunpack.c.l.b16 %v908
        %v1013 = vunpack.c.l.b16 %v909
        %v1014 = vunpack.c.l.b16 %v910
        %v1015 = vunpack.c.l.b16 %v911
        %v1016 = vunpack.c.l.b16 %v912
        %v1017 = vunpack.c.l.b16 %v913
        %v1018 = vunpack.c.l.b16 %v914
        %v1019 = vunpack.c.l.b16 %v915
        %v1020 = vunpack.c.l.b16 %v916
        %v1021 = vunpack.c.l.b16 %v917
        %v1022 = vunpack.c.l.b16 %v918
        %v1023 = vunpack.c.l.b16 %v919
        %v1024 = vunpack.c.l.b16 %v920
        %v1025 = vunpack.c.l.b16 %v921
        %v1026 = vunpack.c.l.b16 %v922
        %v1027 = vunpack.c.l.b16 %v923
        %v1028 = vunpack.c.l.b16 %v924
        %v1029 = vunpack.c.l.b16 %v925
        %v1030 = vunpack.c.l.b16 %v926
        %v1031 = vunpack.c.l.b16 %v927
        %v1032 = vunpack.c.l.b16 %v928
        %v1033 = vunpack.c.l.b16 %v929
        %v1034 = vunpack.c.l.b16 %v930
        %v1035 = vunpack.c.l.b16 %v931
        %v1036 = vunpack.c.l.b16 %v932
        %v1037 = vunpack.c.l.b16 %v933
        %v1038 = vunpack.c.l.b16 %v934
        %v1039 = vunpack.c.l.b16 %v935
        %v1040 = vunpack.c.l.b16 %v936
        %v1041 = vunpack.c.l.b16 %v937
        %v1042 = vpack.c.b16 %v995, %v994
        %v1043 = vpack.c.b16 %v997, %v996
        %v1044 = vpack.c.b16 %v999, %v998
        %v1045 = vpack.c.b16 %v1001, %v1000
        %v1046 = vpack.c.b16 %v1003, %v1002
        %v1047 = vpack.c.b16 %v1005, %v1004
        %v1048 = vpack.c.b16 %v1007, %v1006
        %v1049 = vpack.c.b16 %v1009, %v1008
        %v1050 = vpack.c.b16 %v1011, %v1010
        %v1051 = vpack.c.b16 %v1013, %v1012
        %v1052 = vpack.c.b16 %v1015, %v1014
        %v1053 = vpack.c.b16 %v1017, %v1016
        %v1054 = vpack.c.b16 %v1019, %v1018
        %v1055 = vpack.c.b16 %v1021, %v1020
        %v1056 = vpack.c.b16 %v1023, %v1022
        %v1057 = vpack.c.b16 %v1025, %v1024
        %v1058 = vpack.c.b16 %v1027, %v1026
        %v1059 = vpack.c.b16 %v1029, %v1028
        %v1060 = vpack.c.b16 %v1031, %v1030
        %v1061 = vpack.c.b16 %v1033, %v1032
        %v1062 = vpack.c.b16 %v1035, %v1034
        %v1063 = vpack.c.b16 %v1037, %v1036
        %v1064 = vpack.c.b16 %v1039, %v1038
        %v1065 = vpack.c.b16 %v1041, %v1040
        %1090 = vmatprep.subr.bf16.mxu0 0
        %1091 = vmatpush1.bf16.msra.mxu0 %v1042
        %1092 = vmatprep.subr.bf16.mxu0 0
        %1093 = vmatpush1.bf16.msra.mxu0 %v1043
        %1094 = vmatprep.subr.bf16.mxu0 0
        %1095 = vmatpush1.bf16.msra.mxu0 %v1044
        %1096 = vmatprep.subr.bf16.mxu0 0
        %1097 = vmatpush1.bf16.msra.mxu0 %v1045
        %1098 = vmatprep.subr.bf16.mxu0 0
        %1099 = vmatpush1.bf16.msra.mxu0 %v1046
        %1100 = vmatprep.subr.bf16.mxu0 0
        %1101 = vmatpush1.bf16.msra.mxu0 %v1047
        %1102 = vmatprep.subr.bf16.mxu0 0
        %1103 = vmatpush1.bf16.msra.mxu0 %v1048
        %1104 = vmatprep.subr.bf16.mxu0 0
        %1105 = vmatpush1.bf16.msra.mxu0 %v1049
        %1106 = vmatprep.subr.bf16.mxu0 0
        %1107 = vmatpush1.bf16.msra.mxu0 %v1050
        %1108 = vmatprep.subr.bf16.mxu0 0
        %1109 = vmatpush1.bf16.msra.mxu0 %v1051
        %1110 = vmatprep.subr.bf16.mxu0 0
        %1111 = vmatpush1.bf16.msra.mxu0 %v1052
        %1112 = vmatprep.subr.bf16.mxu0 0
        %1113 = vmatpush1.bf16.msra.mxu0 %v1053
        %1114 = vmatprep.subr.bf16.mxu0 0
        %1115 = vmatpush1.bf16.msra.mxu0 %v1054
        %1116 = vmatprep.subr.bf16.mxu0 0
        %1117 = vmatpush1.bf16.msra.mxu0 %v1055
        %1118 = vmatprep.subr.bf16.mxu0 0
        %1119 = vmatpush1.bf16.msra.mxu0 %v1056
        %1120 = vmatprep.subr.bf16.mxu0 0
        %1121 = vmatpush1.bf16.msra.mxu0 %v1057
        %1122 = vmatprep.mubr.bf16.mxu0 %v887
        %1123 = vmatmul.mubr.bf16.gmra.mrb[0].mxu0 %v886
        %v1124 = vpop.f32.mrb[0].mxu0
        %v1125 = vadd.f32 %v944, %v1124
        %v1126 = vpop.f32.mrb[0].mxu0
        %v1127 = vpop.f32.mrb[0].mxu0
        %v1128 = vpop.f32.mrb[0].mxu0
        %1129 = vdwg.mxu0
        %1130 = vmatprep.subr.bf16.mxu0 0
        %1131 = vmatpush1.bf16.msra.mxu0 %v1058
        %1132 = vmatprep.subr.bf16.mxu0 0
        %1133 = vmatpush1.bf16.msra.mxu0 %v1059
        %1134 = vmatprep.subr.bf16.mxu0 0
        %1135 = vmatpush1.bf16.msra.mxu0 %v1060
        %1136 = vmatprep.subr.bf16.mxu0 0
        %1137 = vmatpush1.bf16.msra.mxu0 %v1061
        %1138 = vmatprep.subr.bf16.mxu0 0
        %1139 = vmatpush1.bf16.msra.mxu0 %v1062
        %1140 = vmatprep.subr.bf16.mxu0 0
        %1141 = vmatpush1.bf16.msra.mxu0 %v1063
        %1142 = vmatprep.subr.bf16.mxu0 0
        %1143 = vmatpush1.bf16.msra.mxu0 %v1064
        %1144 = vmatprep.subr.bf16.mxu0 0
        %1145 = vmatpush1.bf16.msra.mxu0 %v1065
        %1146 = vmatprep.subr.bf16.mxu0 0
        %1147 = vmatpush1.bf16.msra.mxu0 0
        %1148 = vmatprep.subr.bf16.mxu0 0
        %1149 = vmatpush1.bf16.msra.mxu0 0
        %1150 = vmatprep.subr.bf16.mxu0 0
        %1151 = vmatpush1.bf16.msra.mxu0 0
        %1152 = vmatprep.subr.bf16.mxu0 0
        %1153 = vmatpush1.bf16.msra.mxu0 0
        %1154 = vmatprep.subr.bf16.mxu0 0
        %1155 = vmatpush1.bf16.msra.mxu0 0
        %1156 = vmatprep.subr.bf16.mxu0 0
        %1157 = vmatpush1.bf16.msra.mxu0 0
        %1158 = vmatprep.subr.bf16.mxu0 0
        %1159 = vmatpush1.bf16.msra.mxu0 0
        %1160 = vmatprep.subr.bf16.mxu0 0
        %1161 = vmatpush1.bf16.msra.mxu0 0
        %1162 = vmatprep.mubr.bf16.mxu0 0
        %1163 = vmatmul.mubr.bf16.gmra.mrb[0].mxu0 %v888
        %v1164 = vpop.f32.mrb[0].mxu0
        %v1165 = vadd.f32 %v1125, %v1164
        %v1166 = vpop.f32.mrb[0].mxu0
        %v1167 = vpop.f32.mrb[0].mxu0
        %v1168 = vpop.f32.mrb[0].mxu0
        %1169 = vdwg.mxu0
        %v1170 = vmul.f32 %v1165, 0.01
        %v1171 = vmax.f32 %v1165, %v1170
        %1172 = vst.msk [vmem:[%s217] sm:$0xff] %vm522, %v1171
        %s1173 = sand.u32 %s137, 1
        %s1174 = scalar_lea.sflag [#allocation5], %s1173
        %s1175 = sand.u32 %s137, 1
        %s1176 = smul.addr %s1175, 8
        %s1177 = scalar_lea.vmem [#allocation4], %s1176
        // Predicated region
        $region41: #{tpu_custom_call.1} parent=39 // pred_check
          %p1178 = pneg %p147
        $region42: #{tpu_custom_call.1} parent=39 // pred_check_branch
          %1180 = sbr.rel (%p1178) target = $region44
        $region43: #{tpu_custom_call.1} parent=39 // pred_region
          %s1182 = ssub.s32 128, 128
          %1183 = vsyncadd %s1174, %s1182
          %s1184 = smul.addr %s19, 128
          %s1185 = scalar_lea.hbm %s5, %s1184
          %s1187 = sshll.u32 %s1177, 4
          %s1188 = int_to_ptr.vmem [resolvable:$true] %s1187
          %1190 = dma.vmem_to_hbm [thread:$0]  %s1188, 128, %s1185, %s1174
        $region44: #{tpu_custom_call.1} parent=39 // pred_fallthru
          _
      $region40: #{tpu_custom_call.1} parent=5 // pred_fallthru
        _
      %p1191 = scmp.le.s32.totalorder 2, %s14
      // Predicated region
      $region45: #{tpu_custom_call.1} parent=5 // pred_check
        %p1192 = pneg %p1191
      $region46: #{tpu_custom_call.1} parent=5 // pred_check_branch
        %1194 = sbr.rel (%p1192) target = $region48
      $region47: #{tpu_custom_call.1} parent=5 // pred_region
        %s1195 = ssub.s32 %s14, 2
        // Predicated region
        $region49: #{tpu_custom_call.1} parent=47 // pred_check
          %p1196 = pneg %p153
        $region50: #{tpu_custom_call.1} parent=47 // pred_check_branch
          %1198 = sbr.rel (%p1196) target = $region52
        $region51: #{tpu_custom_call.1} parent=47 // pred_region
          %s1199 = sand.u32 %s138, 1
          %s1200 = scalar_lea.sflag [#allocation5], %s1199
          %s1201 = sand.u32 %s138, 1
          %s1202 = smul.addr %s1201, 8
          %s1203 = scalar_lea.vmem [#allocation4], %s1202
          %1204 = dma.done %s1200, 128
        $region52: #{tpu_custom_call.1} parent=47 // pred_fallthru
          _
      $region48: #{tpu_custom_call.1} parent=5 // pred_fallthru
        _
    $region6: #{tpu_custom_call.1} parent=1 // loop_footer
      %s18 = sadd.s32 1, %s14
    $region7: #{tpu_custom_call.1} parent=1 // loop_footer_branch
      %13 = sbr.rel target = $region3
    $region8: #{tpu_custom_call.1} parent=1 // loop_exit
      _
    %1205 = vsyncpa [#allocation5], 1
    %s1206 = scalar_lea.sflag [#allocation5], 1
    %1207 = vsyncpa %s1206, 1

</llo_original>
